<compile_context>
chip_gen: v6e
topology: v6e:2x2x1
jax: 0.10.0
libtpu: 0.0.40
codegen_flags: <defaults>
</compile_context>

<pallas_src>
import functools

import jax
import jax.numpy as jnp
from jax.experimental import pallas as pl
from jax.experimental.pallas import tpu as pltpu

LANE = 128


def channel_attention_kernel(x_ref, w1t_ref, w2t_ref, o_ref, sum_acc, max_acc,
                             *, hw, lane_chunk, n_chunks, needs_mask):
    # x_ref:   (1, C, T_HW)   current spatial tile of one batch element (VMEM)
    # w1t_ref: (C, Ch)        w2t_ref: (Ch, C)   (VMEM-resident, constant index_map)
    # o_ref:   (1, 1, C)
    # sum_acc / max_acc: (1, C, lane_chunk) f32 scratch, persist across spatial steps.
    hw_step = pl.program_id(1)
    n_hw = pl.num_programs(1)
    t_hw = n_chunks * lane_chunk
    unroll = max(1, min(8, n_chunks))

    @pl.when(hw_step == 0)
    def _init():
        sum_acc[...] = jnp.zeros_like(sum_acc)
        max_acc[...] = jnp.full_like(max_acc, -jnp.inf)

    def load_chunk(j):
        # Per-chunk ref load: the tile stays in VMEM, only one chunk is live in vregs.
        start = j * lane_chunk
        if not isinstance(start, int):
            start = pl.multiple_of(start, lane_chunk)
        return x_ref[:, :, pl.ds(start, lane_chunk)].astype(jnp.float32)

    def chunk_loop(body):
        if n_chunks <= 4:
            for j in range(n_chunks):      # short static loop: static slice starts
                body(j)
        else:
            def wrapped(j, carry):
                body(j)
                return carry
            jax.lax.fori_loop(0, n_chunks, wrapped, 0, unroll=unroll)

    def plain_body(j):
        chunk = load_chunk(j)
        sum_acc[...] = sum_acc[...] + chunk
        max_acc[...] = jnp.maximum(max_acc[...], chunk)

    def run_plain():
        chunk_loop(plain_body)

    if needs_mask:
        # Fast path (no mask) on every spatial tile except the last one.
        pl.when(hw_step < n_hw - 1)(run_plain)

        @pl.when(hw_step == n_hw - 1)
        def _run_masked():
            # Iota hoisted out of the loop (emitted once).
            lane_idx = jax.lax.broadcasted_iota(jnp.int32, sum_acc.shape, 2)
            base = hw_step * t_hw

            def masked_body(j):
                chunk = load_chunk(j)
                valid = lane_idx < (hw - base - j * lane_chunk)
                sum_acc[...] = sum_acc[...] + jnp.where(valid, chunk, 0.0)
                max_acc[...] = jnp.maximum(max_acc[...],
                                           jnp.where(valid, chunk, -jnp.inf))

            chunk_loop(masked_body)
    else:
        run_plain()

    @pl.when(hw_step == n_hw - 1)
    def _finalize():
        # Single cross-lane reduce, tiny stacked MLP (2 matmuls), sigmoid, store.
        avg_x = jnp.sum(sum_acc[...], axis=-1) * (1.0 / hw)        # (1, C)
        max_x = jnp.max(max_acc[...], axis=-1)                     # (1, C)
        pooled = jnp.concatenate([avg_x, max_x], axis=0)           # (2, C)
        w1t = w1t_ref[...].astype(jnp.float32)
        w2t = w2t_ref[...].astype(jnp.float32)
        h = jnp.maximum(
            jnp.dot(pooled, w1t, preferred_element_type=jnp.float32), 0.0)
        y = jnp.dot(h, w2t, preferred_element_type=jnp.float32)    # (2, C)
        out = jax.nn.sigmoid(y[0:1, :] + y[1:2, :])                # (1, C)
        o_ref[...] = out.astype(o_ref.dtype).reshape(o_ref.shape)


def channel_attention(x, w1t, w2t, *, max_tile_hw=None):
    """x: (B, C, H, W) f32/bf16; w1t: (C, C//r) = W1.T; w2t: (C//r, C) = W2.T.
    Returns the channel-attention gate of shape (B, C, 1, 1)."""
    B, C, H, W = x.shape
    HW = H * W
    x_flat = x.reshape(B, C, HW)
    itemsize = jnp.dtype(x.dtype).itemsize

    weight_bytes = (w1t.size * jnp.dtype(w1t.dtype).itemsize
                    + w2t.size * jnp.dtype(w2t.dtype).itemsize)

    # Generation-aware VMEM capacity (v5e/v6e: 128 MiB, v7x: 64 MiB physical).
    try:
        vmem_cap = int(pltpu.get_tpu_info().vmem_capacity_bytes)
    except Exception:
        vmem_cap = 64 * 2 ** 20

    if HW < LANE:
        # Tiny spatial extent: single full-width tile (block last dim == array dim).
        t_hw = HW
        lane_chunk = HW
    else:
        # Per-block budget: large enough to amortize the ~0.35us/grid-step overhead,
        # capped so 2 input buffers + weights + scratch + headroom fit comfortably.
        headroom = 8 * 2 ** 20
        usable = max(4 * 2 ** 20, (vmem_cap * 3) // 4 - 2 * weight_bytes - headroom)
        target_block = min(12 * 2 ** 20, usable // 2)
        t_hw = max(LANE, (target_block // max(1, C * itemsize)) // LANE * LANE)
        t_hw = min(t_hw, (HW // LANE) * LANE)
        if max_tile_hw is not None:
            t_hw = min(t_hw, max(LANE, (max_tile_hw // LANE) * LANE))
        # Wider per-chunk loads when the accumulators stay small (<= 32 vregs each).
        lane_chunk = 256 if (C <= 128 and t_hw % 256 == 0) else LANE

    n_hw = pl.cdiv(HW, t_hw)
    n_chunks = t_hw // lane_chunk
    needs_mask = (HW % t_hw) != 0

    kernel = functools.partial(
        channel_attention_kernel, hw=HW, lane_chunk=lane_chunk,
        n_chunks=n_chunks, needs_mask=needs_mask)

    # Explicit VMEM budget: double-buffered input block + resident weights + scratch.
    block_bytes = C * t_hw * itemsize
    scratch_bytes = 2 * C * lane_chunk * 4
    needed = (2 * block_bytes + 2 * weight_bytes + scratch_bytes
              + 4 * C * itemsize + 4 * 2 ** 20)
    vmem_limit = int(min(max(needed, 16 * 2 ** 20), vmem_cap - 8 * 2 ** 20))

    Ch = w1t.shape[1]
    cost = pl.CostEstimate(
        flops=int(2 * B * C * HW + 8 * B * C * Ch),     # sum/max passes + tiny MLP
        transcendentals=int(B * C),                     # sigmoid
        bytes_accessed=int(B * C * HW * itemsize + weight_bytes + B * C * itemsize),
    )

    out = pl.pallas_call(
        kernel,
        out_shape=jax.ShapeDtypeStruct((B, 1, C), x.dtype),
        grid_spec=pltpu.PrefetchScalarGridSpec(
            num_scalar_prefetch=0,
            grid=(B, n_hw),
            in_specs=[
                pl.BlockSpec((1, C, t_hw), lambda b, i: (b, 0, i)),
                pl.BlockSpec(w1t.shape, lambda b, i: (0, 0)),   # resident weights
                pl.BlockSpec(w2t.shape, lambda b, i: (0, 0)),
            ],
            out_specs=pl.BlockSpec((1, 1, C), lambda b, i: (b, 0, 0)),
            scratch_shapes=[
                pltpu.VMEM((1, C, lane_chunk), jnp.float32),    # running sum (per-lane)
                pltpu.VMEM((1, C, lane_chunk), jnp.float32),    # running max (per-lane)
            ],
        ),
        compiler_params=pltpu.CompilerParams(
            dimension_semantics=("parallel", "arbitrary"),
            vmem_limit_bytes=vmem_limit,
        ),
        cost_estimate=cost,
    )(x_flat, w1t, w2t)

    # TODO(synk): on v7x with B==1 a second parallel HW-split axis would use both
    # TensorCores; omitted here since it is a no-op on v5e/v6e.
    return out.reshape(B, C, 1, 1)


def reference(x, w1t, w2t):
    avg_x = jnp.mean(x, axis=(2, 3))
    max_x = jnp.max(x, axis=(2, 3))

    def mlp(v):
        return jnp.maximum(v @ w1t, 0.0) @ w2t

    out = jax.nn.sigmoid(mlp(avg_x) + mlp(max_x))
    return out[:, :, None, None]


if __name__ == "__main__":
    ratio = 16
    key = jax.random.PRNGKey(0)

    configs = [
        # (B, C, H, W, max_tile_hw)
        (2, 32, 16, 16, 128),    # HW=256, two spatial grid steps -> accumulation
        (2, 32, 10, 13, None),   # HW=130, partial last tile -> masked path
        (1, 32, 7, 7, None),     # HW=49 < 128 -> single narrow tile
        (1, 32, 48, 48, None),   # HW=2304 -> fori_loop chunk loop, lane_chunk=256
        (1, 32, 47, 47, None),   # HW=2209 -> fori_loop + mask on last grid step
    ]

    for idx, (B, C, H, W, max_tile_hw) in enumerate(configs):
        kk = jax.random.fold_in(key, idx)
        kx, k1, k2 = jax.random.split(kk, 3)
        Ch = max(1, C // ratio)
        x = jax.random.normal(kx, (B, C, H, W), dtype=jnp.float32)
        # PyTorch Linear weights are (out, in); we store them pre-transposed.
        w1t = jax.random.normal(k1, (C, Ch), dtype=jnp.float32) * 0.1
        w2t = jax.random.normal(k2, (Ch, C), dtype=jnp.float32) * 0.1

        out = jax.block_until_ready(
            channel_attention(x, w1t, w2t, max_tile_hw=max_tile_hw))
        ref = jax.block_until_ready(reference(x, w1t, w2t))

        assert out.shape == (B, C, 1, 1), out.shape
        assert jnp.allclose(out, ref, atol=1e-5, rtol=1e-5), f"mismatch, config {idx}"

    print("KERNEL_OK")
</pallas_src>

<mosaic_0001>
module attributes {stable_mosaic.version = 11 : i64} {
  func.func @channel_attention_kernel(%arg0: i32, %arg1: i32, %arg2: memref<1x32x128xf32, #tpu.memory_space<vmem>>, %arg3: memref<32x2xf32, #tpu.memory_space<vmem>>, %arg4: memref<2x32xf32, #tpu.memory_space<vmem>>, %arg5: memref<1x1x32xf32, #tpu.memory_space<vmem>>, %arg6: memref<1x32x128xf32, #tpu.memory_space<vmem>>, %arg7: memref<1x32x128xf32, #tpu.memory_space<vmem>>) attributes {dimension_semantics = [#tpu.dimension_semantics<parallel>, #tpu.dimension_semantics<arbitrary>], iteration_bounds = array<i64: 2, 2>, scalar_prefetch = 0 : i64, scratch_operands = 2 : i64, tpu.core_type = #tpu.core_type<tc>, window_params = [{transform_indices = @transform_0, window_bounds = array<i64: 1, 32, 128>}, {pipeline_mode = #tpu.pipeline_mode<synchronous>, transform_indices = @transform_1, window_bounds = array<i64: 32, 2>}, {pipeline_mode = #tpu.pipeline_mode<synchronous>, transform_indices = @transform_2, window_bounds = array<i64: 2, 32>}, {transform_indices = @transform_3, window_bounds = array<i64: 1, 1, 32>}]} {
    %c0_i32 = arith.constant 0 : i32
    %0 = arith.cmpi eq, %arg1, %c0_i32 : i32
    %1 = arith.extui %0 : i1 to i32
    %c0_i32_0 = arith.constant 0 : i32
    %2 = arith.cmpi ne, %1, %c0_i32_0 : i32
    scf.if %2 {
      %cst = arith.constant 0.000000e+00 : f32
      %13 = vector.broadcast %cst : f32 to vector<1x32x128xf32>
      %c0_16 = arith.constant 0 : index
      %c0_17 = arith.constant 0 : index
      %c0_18 = arith.constant 0 : index
      %14 = vector.load %arg6[%c0_16, %c0_17, %c0_18] : memref<1x32x128xf32, #tpu.memory_space<vmem>>, vector<1x32x128xf32>
      tpu.vector_store %arg6[%c0_16, %c0_17, %c0_18], %13 {strides = array<i32>} : memref<1x32x128xf32, #tpu.memory_space<vmem>>, vector<1x32x128xf32>,
      %cst_19 = arith.constant 0xFF800000 : f32
      %15 = vector.broadcast %cst_19 : f32 to vector<1x32x128xf32>
      %c0_20 = arith.constant 0 : index
      %c0_21 = arith.constant 0 : index
      %c0_22 = arith.constant 0 : index
      %16 = vector.load %arg7[%c0_20, %c0_21, %c0_22] : memref<1x32x128xf32, #tpu.memory_space<vmem>>, vector<1x32x128xf32>
      tpu.vector_store %arg7[%c0_20, %c0_21, %c0_22], %15 {strides = array<i32>} : memref<1x32x128xf32, #tpu.memory_space<vmem>>, vector<1x32x128xf32>,
    } else {
    }
    %c0 = arith.constant 0 : index
    %c0_1 = arith.constant 0 : index
    %c0_2 = arith.constant 0 : index
    %3 = vector.load %arg2[%c0, %c0_1, %c0_2] : memref<1x32x128xf32, #tpu.memory_space<vmem>>, vector<1x32x128xf32>
    %c0_3 = arith.constant 0 : index
    %c0_4 = arith.constant 0 : index
    %c0_5 = arith.constant 0 : index
    %4 = vector.load %arg6[%c0_3, %c0_4, %c0_5] : memref<1x32x128xf32, #tpu.memory_space<vmem>>, vector<1x32x128xf32>
    %5 = arith.addf %4, %3 : vector<1x32x128xf32>
    %c0_6 = arith.constant 0 : index
    %c0_7 = arith.constant 0 : index
    %c0_8 = arith.constant 0 : index
    %6 = vector.load %arg6[%c0_6, %c0_7, %c0_8] : memref<1x32x128xf32, #tpu.memory_space<vmem>>, vector<1x32x128xf32>
    tpu.vector_store %arg6[%c0_6, %c0_7, %c0_8], %5 {strides = array<i32>} : memref<1x32x128xf32, #tpu.memory_space<vmem>>, vector<1x32x128xf32>,
    %c0_9 = arith.constant 0 : index
    %c0_10 = arith.constant 0 : index
    %c0_11 = arith.constant 0 : index
    %7 = vector.load %arg7[%c0_9, %c0_10, %c0_11] : memref<1x32x128xf32, #tpu.memory_space<vmem>>, vector<1x32x128xf32>
    %8 = arith.maximumf %7, %3 : vector<1x32x128xf32>
    %c0_12 = arith.constant 0 : index
    %c0_13 = arith.constant 0 : index
    %c0_14 = arith.constant 0 : index
    %9 = vector.load %arg7[%c0_12, %c0_13, %c0_14] : memref<1x32x128xf32, #tpu.memory_space<vmem>>, vector<1x32x128xf32>
    tpu.vector_store %arg7[%c0_12, %c0_13, %c0_14], %8 {strides = array<i32>} : memref<1x32x128xf32, #tpu.memory_space<vmem>>, vector<1x32x128xf32>,
    %c1_i32 = arith.constant 1 : i32
    %10 = arith.cmpi eq, %arg1, %c1_i32 : i32
    %11 = arith.extui %10 : i1 to i32
    %c0_i32_15 = arith.constant 0 : i32
    %12 = arith.cmpi ne, %11, %c0_i32_15 : i32
    scf.if %12 {
      %c0_16 = arith.constant 0 : index
      %c0_17 = arith.constant 0 : index
      %c0_18 = arith.constant 0 : index
      %13 = vector.load %arg6[%c0_16, %c0_17, %c0_18] : memref<1x32x128xf32, #tpu.memory_space<vmem>>, vector<1x32x128xf32>
      %cst = arith.constant dense<0.000000e+00> : vector<1x32xf32>
      %14 = vector.multi_reduction <add>, %13, %cst [2] : vector<1x32x128xf32> to vector<1x32xf32>
      %cst_19 = arith.constant 3.906250e-03 : f32
      %15 = vector.broadcast %cst_19 : f32 to vector<1x32xf32>
      %16 = arith.mulf %14, %15 : vector<1x32xf32>
      %c0_20 = arith.constant 0 : index
      %c0_21 = arith.constant 0 : index
      %c0_22 = arith.constant 0 : index
      %17 = vector.load %arg7[%c0_20, %c0_21, %c0_22] : memref<1x32x128xf32, #tpu.memory_space<vmem>>, vector<1x32x128xf32>
      %cst_23 = arith.constant dense<0xFF800000> : vector<1x32xf32>
      %18 = vector.multi_reduction <maximumf>, %17, %cst_23 [2] : vector<1x32x128xf32> to vector<1x32xf32>
      %19 = tpu.concatenate %16, %18 in 0 : vector<1x32xf32>, vector<1x32xf32> -> vector<2x32xf32>
      %c0_24 = arith.constant 0 : index
      %c0_25 = arith.constant 0 : index
      %20 = vector.load %arg3[%c0_24, %c0_25] : memref<32x2xf32, #tpu.memory_space<vmem>>, vector<32x2xf32>
      %c0_26 = arith.constant 0 : index
      %c0_27 = arith.constant 0 : index
      %21 = vector.load %arg4[%c0_26, %c0_27] : memref<2x32xf32, #tpu.memory_space<vmem>>, vector<2x32xf32>
      %cst_28 = arith.constant dense<0.000000e+00> : vector<2x2xf32>
      %22 = tpu.matmul %19, %20, %cst_28 {dimension_numbers = #tpu.dot_dimension_numbers<[1], [0], [0], [1], [0, 0, 1, 1], [], []>} : vector<2x32xf32>, vector<32x2xf32>, vector<2x2xf32> -> vector<2x2xf32>
      %cst_29 = arith.constant 0.000000e+00 : f32
      %23 = vector.broadcast %cst_29 : f32 to vector<2x2xf32>
      %24 = arith.maximumf %22, %23 : vector<2x2xf32>
      %cst_30 = arith.constant dense<0.000000e+00> : vector<2x32xf32>
      %25 = tpu.matmul %24, %21, %cst_30 {dimension_numbers = #tpu.dot_dimension_numbers<[1], [0], [0], [1], [0, 0, 1, 1], [], []>} : vector<2x2xf32>, vector<2x32xf32>, vector<2x32xf32> -> vector<2x32xf32>
      %26 = vector.extract_strided_slice %25 {offsets = [0, 0], sizes = [1, 32], strides = [1, 1]} : vector<2x32xf32> to vector<1x32xf32>
      %27 = vector.extract_strided_slice %25 {offsets = [1, 0], sizes = [1, 32], strides = [1, 1]} : vector<2x32xf32> to vector<1x32xf32>
      %28 = arith.addf %26, %27 : vector<1x32xf32>
      %29 = arith.negf %28 : vector<1x32xf32>
      %30 = math.exp %29 : vector<1x32xf32>
      %cst_31 = arith.constant 1.000000e+00 : f32
      %31 = vector.broadcast %cst_31 : f32 to vector<1x32xf32>
      %32 = arith.addf %31, %30 : vector<1x32xf32>
      %33 = arith.divf %31, %32 : vector<1x32xf32>
      %34 = vector.shape_cast %33 : vector<1x32xf32> to vector<1x1x32xf32>
      %c0_32 = arith.constant 0 : index
      %c0_33 = arith.constant 0 : index
      %c0_34 = arith.constant 0 : index
      %35 = vector.load %arg5[%c0_32, %c0_33, %c0_34] : memref<1x1x32xf32, #tpu.memory_space<vmem>>, vector<1x1x32xf32>
      tpu.vector_store %arg5[%c0_32, %c0_33, %c0_34], %34 {strides = array<i32>} : memref<1x1x32xf32, #tpu.memory_space<vmem>>, vector<1x1x32xf32>,
    } else {
    }
    return
  }
  func.func @transform_0(%arg0: i32, %arg1: i32) -> (i32, i32, i32) {
    %c0_i32 = arith.constant 0 : i32
    %c0_i32_0 = arith.constant 0 : i32
    return %arg0, %c0_i32, %arg1 : i32, i32, i32
  }
  func.func @transform_1(%arg0: i32, %arg1: i32) -> (i32, i32) {
    %c0_i32 = arith.constant 0 : i32
    %c0_i32_0 = arith.constant 0 : i32
    %c0_i32_1 = arith.constant 0 : i32
    return %c0_i32, %c0_i32_0 : i32, i32
  }
  func.func @transform_2(%arg0: i32, %arg1: i32) -> (i32, i32) {
    %c0_i32 = arith.constant 0 : i32
    %c0_i32_0 = arith.constant 0 : i32
    %c0_i32_1 = arith.constant 0 : i32
    return %c0_i32, %c0_i32_0 : i32, i32
  }
  func.func @transform_3(%arg0: i32, %arg1: i32) -> (i32, i32, i32) {
    %c0_i32 = arith.constant 0 : i32
    %c0_i32_0 = arith.constant 0 : i32
    %c0_i32_1 = arith.constant 0 : i32
    return %arg0, %c0_i32, %c0_i32_0 : i32, i32, i32
  }
}

</mosaic_0001>

<llo_original>
// kernel: tpu_custom_call.1
$region0: #{tpu_custom_call.1}
  #allocation0 [shape = 'u32[]', space=smem, size = 0x4, offset = 0x4, fixed_abs, tag = 'smem constant byte address 0x4 - core index']
  #allocation1 [shape = 'u32[144,128]{1,0:T(1,128)}', space=vmem, size = 0x12000, scoped, tag = 'internal scratch']
  #allocation2 [shape = 'f32[1,32,128]{2,1,0:T(8,128)}', space=vmem, size = 0x4000, scoped, tag = 'scratch operand']
  #allocation3 [shape = 'f32[1,32,128]{2,1,0:T(8,128)}', space=vmem, size = 0x4000, scoped, tag = 'scratch operand']
  %s0 = inlined_call_operand.hbm [shape: f32[2,32,256], index: 0, kind: input, shape index: {}]
  %s1 = inlined_call_operand.vmem [shape: f32[32,2], index: 1, kind: input, shape index: {}]
  %s2 = inlined_call_operand.vmem [shape: f32[2,32], index: 2, kind: input, shape index: {}]
  %s3 = inlined_call_operand.hbm [shape: f32[2,1,32], index: 3, kind: output, shape index: {}]
  %s4 = sld [smem:[#allocation0]]
  $region57: #{tpu_custom_call.1} parent=0
    _
  %s6 = ssub.s32 1, %s4
  %s7 = scalar_select 0, %s6, %s4
  $region1: #{tpu_custom_call.1} parent=0
    #allocation4 [shape = 'u8[32768]{0}', space=vmem, size = 0x8000, scoped, tag = 'input window, operand 0']
    #allocation5 [shape = 's32[2]{0}', space=sflag, size = 0x8, scoped, tag = 'scoped memory for tpu_custom_call.1']
    #allocation6 [shape = 's32[2]{0}', space=sflag, size = 0x8, scoped, tag = 'scoped memory for tpu_custom_call.1']
    #allocation7 [shape = 'u8[1024]{0}', space=vmem, size = 0x400, scoped, tag = 'output window, operand 0']
    %8 = vsyncpa [#allocation5], 0
    %s9 = scalar_lea.sflag [#allocation5], 1
    %10 = vsyncpa %s9, 0
    %11 = vsyncpa [#allocation6], 0
    %s12 = scalar_lea.sflag [#allocation6], 1
    %13 = vsyncpa %s12, 0
    loop: start=0, step=1, limit=6
    $region2: #{tpu_custom_call.1} parent=1 // loop_pre_header
      _
    $region3: #{tpu_custom_call.1} parent=1 // loop_header
      %s15 = sphi 0, %s19
      %p16 = scmp.ge.s32.totalorder %s15, 6
      %s22 = sphi 0, %s34
      %s23 = sphi 0, %s30
      %s24 = sphi 0, %s22
      %s25 = sphi 0, %s23
      %s26 = sphi 0, %s24
      %s27 = sphi 0, %s25
      %s39 = sphi 0, %s41
      %s42 = sphi 0, %s39
      %s43 = sphi 0, %s42
      %s59 = sphi 0, %s43
      %s63 = sphi 0, %s63
      %s65 = sphi 0, %s63
      %s66 = sphi 0, %s65
      %s80 = sphi 0, %s66
      %s84 = sphi 0, %s84
      %s86 = sphi 0, %s84
      %s87 = sphi 0, %s86
      %s101 = sphi 0, %s87
      %s107 = sphi 0, %s109
      %s110 = sphi 0, %s107
      %s111 = sphi 0, %s110
      %s127 = sphi 0, %s111
    $region4: #{tpu_custom_call.1} parent=1 // loop_header_branch
      %18 = sbr.rel (%p16) target = $region8
    $region5: #{tpu_custom_call.1} parent=1 // loop_body
      %s20 = ssub.s32 %s15, 1
      %s21 = ssub.s32 %s15, 2
      %s28 = sadd.s32 1, %s23
      %p29 = scmp.ge.s32.totalorder %s28, 2
      %s30 = scalar_select %p29, 0, %s28
      %s31 = sadd.s32 1, %s22
      %s32 = scalar_select %p29, %s31, %s22
      %p33 = scmp.ge.s32.totalorder %s32, 2
      %s34 = scalar_select %p33, 0, %s32
      %s35 = ssub.s32 %s22, %s34
      %s36 = ssub.s32 %s23, %s30
      %s37 = sor.u32 %s35, %s36
      %p38 = scmp.eq.s32.totalorder %s37, 0
      %s40 = sadd.s32 %s39, 1
      %s41 = scalar_select %p38, %s39, %s40
      %p44 = pneg %p38
      %p45 = scmp.eq.s32.totalorder %s15, 3
      %p46 = por %p44, %p45
      %p47 = scmp.ne.s32.totalorder %s39, %s42
      %p48 = scmp.eq.s32.totalorder %s15, 0
      %p49 = por %p47, %p48
      %p50 = scmp.ne.s32.totalorder %s39, %s42
      %p51 = scmp.eq.s32.totalorder %s20, 3
      %p52 = por %p50, %p51
      %p53 = scmp.ne.s32.totalorder %s42, %s43
      %p54 = scmp.eq.s32.totalorder %s20, 0
      %p55 = por %p53, %p54
      %p56 = scmp.ne.s32.totalorder %s42, %s43
      %p57 = scmp.eq.s32.totalorder %s21, 3
      %p58 = por %p56, %p57
      %p60 = scmp.ne.s32.totalorder %s43, %s59
      %p61 = scmp.eq.s32.totalorder %s21, 0
      %p62 = por %p60, %p61
      %s64 = sadd.s32 %s63, 1
      %p67 = scmp.eq.s32.totalorder %s15, 3
      %p68 = scmp.ne.s32.totalorder %s63, %s65
      %p69 = scmp.eq.s32.totalorder %s15, 0
      %p70 = por %p68, %p69
      %p71 = scmp.ne.s32.totalorder %s63, %s65
      %p72 = scmp.eq.s32.totalorder %s20, 3
      %p73 = por %p71, %p72
      %p74 = scmp.ne.s32.totalorder %s65, %s66
      %p75 = scmp.eq.s32.totalorder %s20, 0
      %p76 = por %p74, %p75
      %p77 = scmp.ne.s32.totalorder %s65, %s66
      %p78 = scmp.eq.s32.totalorder %s21, 3
      %p79 = por %p77, %p78
      %p81 = scmp.ne.s32.totalorder %s66, %s80
      %p82 = scmp.eq.s32.totalorder %s21, 0
      %p83 = por %p81, %p82
      %s85 = sadd.s32 %s84, 1
      %p88 = scmp.eq.s32.totalorder %s15, 3
      %p89 = scmp.ne.s32.totalorder %s84, %s86
      %p90 = scmp.eq.s32.totalorder %s15, 0
      %p91 = por %p89, %p90
      %p92 = scmp.ne.s32.totalorder %s84, %s86
      %p93 = scmp.eq.s32.totalorder %s20, 3
      %p94 = por %p92, %p93
      %p95 = scmp.ne.s32.totalorder %s86, %s87
      %p96 = scmp.eq.s32.totalorder %s20, 0
      %p97 = por %p95, %p96
      %p98 = scmp.ne.s32.totalorder %s86, %s87
      %p99 = scmp.eq.s32.totalorder %s21, 3
      %p100 = por %p98, %p99
      %p102 = scmp.ne.s32.totalorder %s87, %s101
      %p103 = scmp.eq.s32.totalorder %s21, 0
      %p104 = por %p102, %p103
      %s105 = ssub.s32 %s22, %s34
      %p106 = scmp.eq.s32.totalorder %s105, 0
      %s108 = sadd.s32 %s107, 1
      %s109 = scalar_select %p106, %s107, %s108
      %p112 = pneg %p106
      %p113 = scmp.eq.s32.totalorder %s15, 3
      %p114 = por %p112, %p113
      %p115 = scmp.ne.s32.totalorder %s107, %s110
      %p116 = scmp.eq.s32.totalorder %s15, 0
      %p117 = por %p115, %p116
      %p118 = scmp.ne.s32.totalorder %s107, %s110
      %p119 = scmp.eq.s32.totalorder %s20, 3
      %p120 = por %p118, %p119
      %p121 = scmp.ne.s32.totalorder %s110, %s111
      %p122 = scmp.eq.s32.totalorder %s20, 0
      %p123 = por %p121, %p122
      %p124 = scmp.ne.s32.totalorder %s110, %s111
      %p125 = scmp.eq.s32.totalorder %s21, 3
      %p126 = por %p124, %p125
      %p128 = scmp.ne.s32.totalorder %s111, %s127
      %p129 = scmp.eq.s32.totalorder %s21, 0
      %p130 = por %p128, %p129
      %p131 = scmp.le.s32.totalorder 1, %s15
      %p132 = scmp.lt.s32.totalorder %s15, 5
      %p133 = pnand %p131, %p132
      %p134 = pneg %p133
      // Predicated region
      $region9: #{tpu_custom_call.1} parent=5 // pred_check
        _
      $region10: #{tpu_custom_call.1} parent=5 // pred_check_branch
        %136 = sbr.rel (%p133) target = $region12
      $region11: #{tpu_custom_call.1} parent=5 // pred_region
        %s137 = ssub.s32 %s15, 1
        // Predicated region
        $region13: #{tpu_custom_call.1} parent=11 // pred_check
          %p138 = pneg %p76
        $region14: #{tpu_custom_call.1} parent=11 // pred_check_branch
          %140 = sbr.rel (%p138) target = $region16
        $region15: #{tpu_custom_call.1} parent=11 // pred_region
          _
        $region16: #{tpu_custom_call.1} parent=11 // pred_fallthru
          _
        // Predicated region
        $region17: #{tpu_custom_call.1} parent=11 // pred_check
          %p141 = pneg %p97
        $region18: #{tpu_custom_call.1} parent=11 // pred_check_branch
          %143 = sbr.rel (%p141) target = $region20
        $region19: #{tpu_custom_call.1} parent=11 // pred_region
          _
        $region20: #{tpu_custom_call.1} parent=11 // pred_fallthru
          _
      $region12: #{tpu_custom_call.1} parent=5 // pred_fallthru
        _
      %p144 = scmp.lt.s32.totalorder %s15, 4
      // Predicated region
      $region21: #{tpu_custom_call.1} parent=5 // pred_check
        %p145 = pneg %p144
      $region22: #{tpu_custom_call.1} parent=5 // pred_check_branch
        %147 = sbr.rel (%p145) target = $region24
      $region23: #{tpu_custom_call.1} parent=5 // pred_region
        // Predicated region
        $region25: #{tpu_custom_call.1} parent=23 // pred_check
          %p148 = pneg %p49
        $region26: #{tpu_custom_call.1} parent=23 // pred_check_branch
          %150 = sbr.rel (%p148) target = $region28
        $region27: #{tpu_custom_call.1} parent=23 // pred_region
          %s151 = sand.u32 %s39, 1
          %s152 = scalar_lea.sflag [#allocation5], %s151
          %s153 = sand.u32 %s39, 1
          %s154 = smul.addr %s153, 32
          %s155 = scalar_lea.vmem [#allocation4], %s154
          %s157 = ssub.s32 512, 512
          %158 = vsyncadd %s152, %s157
          %s159 = smul.addr %s22, 8
          %s160 = sadd.s32 %s23, %s159
          %s161 = smul.addr %s160, 128
          %s162 = scalar_lea.hbm %s0, %s161
          %s163 = sshll.u32 %s155, 4
          %s164 = int_to_ptr.vmem [resolvable:$true] %s163
          %169 = dma.hbm_to_vmem [thread:$0]  %s162, 512, %s164, %s152, 256, 128, 8
        $region28: #{tpu_custom_call.1} parent=23 // pred_fallthru
          _
      $region24: #{tpu_custom_call.1} parent=5 // pred_fallthru
        _
      %p170 = scmp.le.s32.totalorder 1, %s15
      %p171 = scmp.lt.s32.totalorder %s15, 5
      %p172 = pnand %p170, %p171
      %p173 = pneg %p172
      // Predicated region
      $region29: #{tpu_custom_call.1} parent=5 // pred_check
        _
      $region30: #{tpu_custom_call.1} parent=5 // pred_check_branch
        %175 = sbr.rel (%p172) target = $region32
      $region31: #{tpu_custom_call.1} parent=5 // pred_region
        %s176 = ssub.s32 %s15, 1
        %s177 = sand.u32 %s42, 1
        %s178 = scalar_lea.sflag [#allocation5], %s177
        %s179 = sand.u32 %s42, 1
        %s180 = smul.addr %s179, 32
        %s181 = scalar_lea.vmem [#allocation4], %s180
        // Predicated region
        $region33: #{tpu_custom_call.1} parent=31 // pred_check
          %p182 = pneg %p55
        $region34: #{tpu_custom_call.1} parent=31 // pred_check_branch
          %184 = sbr.rel (%p182) target = $region36
        $region35: #{tpu_custom_call.1} parent=31 // pred_region
          %185 = dma.done %s178, 512
        $region36: #{tpu_custom_call.1} parent=31 // pred_fallthru
          _
        %s186 = sand.u32 %s42, 1
        %s187 = scalar_lea.sflag [#allocation5], %s186
        %s188 = sand.u32 %s42, 1
        %s189 = smul.addr %s188, 32
        %s190 = scalar_lea.vmem [#allocation4], %s189
        %p191 = pneg %p55
        %p192 = pneg %p52
        %p193 = pneg %p76
        %p194 = pneg %p73
        %p195 = pneg %p97
        %p196 = pneg %p94
        %p197 = pneg %p123
        %p198 = pneg %p120
        %s199 = sand.u32 %s110, 1
        %s200 = scalar_lea.sflag [#allocation6], %s199
        %s201 = sand.u32 %s110, 1
        %s202 = scalar_lea.vmem [#allocation7], %s201
        %p203 = scmp.eq.s32.totalorder %s25, 0
        // Predicated region
        $region37: #{tpu_custom_call.1} parent=31 // pred_check
          %p204 = pneg %p203
        $region38: #{tpu_custom_call.1} parent=31 // pred_check_branch
          %206 = sbr.rel (%p204) target = $region40
        $region39: #{tpu_custom_call.1} parent=31 // pred_region
          %207 = vst [vmem:[#allocation2] sm:$0xff] 0.0
          %208 = vst [vmem:[#allocation2 + $0x8] sm:$0xff] 0.0
          %209 = vst [vmem:[#allocation2 + $0x10] sm:$0xff] 0.0
          %210 = vst [vmem:[#allocation2 + $0x18] sm:$0xff] 0.0
          %211 = vst [vmem:[#allocation3] sm:$0xff] -inf
          %212 = vst [vmem:[#allocation3 + $0x8] sm:$0xff] -inf
          %213 = vst [vmem:[#allocation3 + $0x10] sm:$0xff] -inf
          %214 = vst [vmem:[#allocation3 + $0x18] sm:$0xff] -inf
        $region40: #{tpu_custom_call.1} parent=31 // pred_fallthru
          _
        %v215 = vld [vmem:[%s181] sm:$0xff]
        %v216 = vld [vmem:[%s181 + $0x8] sm:$0xff]
        %v217 = vld [vmem:[%s181 + $0x10] sm:$0xff]
        %v218 = vld [vmem:[%s181 + $0x18] sm:$0xff]
        %v219 = vld [vmem:[#allocation2] sm:$0xff]
        %v220 = vld [vmem:[#allocation2 + $0x8] sm:$0xff]
        %v221 = vld [vmem:[#allocation2 + $0x10] sm:$0xff]
        %v222 = vld [vmem:[#allocation2 + $0x18] sm:$0xff]
        %v223 = vadd.f32 %v219, %v215
        %v224 = vadd.f32 %v220, %v216
        %v225 = vadd.f32 %v221, %v217
        %v226 = vadd.f32 %v222, %v218
        %227 = vst [vmem:[#allocation2] sm:$0xff] %v223
        %228 = vst [vmem:[#allocation2 + $0x8] sm:$0xff] %v224
        %229 = vst [vmem:[#allocation2 + $0x10] sm:$0xff] %v225
        %230 = vst [vmem:[#allocation2 + $0x18] sm:$0xff] %v226
        %v231 = vld [vmem:[#allocation3] sm:$0xff]
        %v232 = vld [vmem:[#allocation3 + $0x8] sm:$0xff]
        %v233 = vld [vmem:[#allocation3 + $0x10] sm:$0xff]
        %v234 = vld [vmem:[#allocation3 + $0x18] sm:$0xff]
        %v235 = vmax.f32 %v231, %v215
        %v236 = vmax.f32 %v232, %v216
        %v237 = vmax.f32 %v233, %v217
        %v238 = vmax.f32 %v234, %v218
        %239 = vst [vmem:[#allocation3] sm:$0xff] %v235
        %240 = vst [vmem:[#allocation3 + $0x8] sm:$0xff] %v236
        %241 = vst [vmem:[#allocation3 + $0x10] sm:$0xff] %v237
        %242 = vst [vmem:[#allocation3 + $0x18] sm:$0xff] %v238
        %p243 = scmp.eq.s32.totalorder %s25, 1
        // Predicated region
        $region41: #{tpu_custom_call.1} parent=31 // pred_check
          %p244 = pneg %p243
        $region42: #{tpu_custom_call.1} parent=31 // pred_check_branch
          %246 = sbr.rel (%p244) target = $region44
        $region43: #{tpu_custom_call.1} parent=31 // pred_region
          %v247 = vld [vmem:[#allocation2] sm:$0xff]
          %v248 = vld [vmem:[#allocation2 + $0x8] sm:$0xff]
          %v249 = vld [vmem:[#allocation2 + $0x10] sm:$0xff]
          %v250 = vld [vmem:[#allocation2 + $0x18] sm:$0xff]
          %251 = vadd.xlane.f32.xlu0 %v247
          %v252 = vpop.xlane.xlu0 %251
          %253 = vadd.xlane.f32.xlu0 %v248
          %v254 = vpop.xlane.xlu0 %253
          %255 = vadd.xlane.f32.xlu0 %v249
          %v256 = vpop.xlane.xlu0 %255
          %257 = vadd.xlane.f32.xlu0 %v250
          %v258 = vpop.xlane.xlu0 %257
          %v259 = vmul.f32 %v252, 0.00390625
          %v260 = vmul.f32 %v254, 0.00390625
          %v261 = vmul.f32 %v256, 0.00390625
          %v262 = vmul.f32 %v258, 0.00390625
          %v263 = vld [vmem:[#allocation3] sm:$0xff]
          %v264 = vld [vmem:[#allocation3 + $0x8] sm:$0xff]
          %v265 = vld [vmem:[#allocation3 + $0x10] sm:$0xff]
          %v266 = vld [vmem:[#allocation3 + $0x18] sm:$0xff]
          %267 = vmax.xlane.f32.xlu0 %v263
          %v268 = vpop.xlane.xlu0 %267
          %269 = vmax.xlane.f32.xlu0 %v264
          %v270 = vpop.xlane.xlu0 %269
          %271 = vmax.xlane.f32.xlu0 %v265
          %v272 = vpop.xlane.xlu0 %271
          %273 = vmax.xlane.f32.xlu0 %v266
          %v274 = vpop.xlane.xlu0 %273
          %v279 = vlaneseq
          %v280 = vand.u32 %v279, 127
          %v281 = vlaneseq
          %v282 = vshrl.u32 %v281, 7
          %v283 = vsub.s32 %v280, %v282
          %v284 = vrot.slane %v259, %v283
          %v285 = vadd.s32 %v280, 4294967288
          %v286 = vlaneseq
          %v287 = vshrl.u32 %v286, 7
          %v288 = vsub.s32 %v285, %v287
          %v289 = vrot.slane %v260, %v288
          %vm290 = vcmask 130112
          %v291 = vsel %vm290, %v289, %v284
          %v292 = vadd.s32 %v280, 4294967280
          %v293 = vlaneseq
          %v294 = vshrl.u32 %v293, 7
          %v295 = vsub.s32 %v292, %v294
          %v296 = vrot.slane %v261, %v295
          %vm297 = vcmask 195712
          %v298 = vsel %vm297, %v296, %v291
          %v299 = vadd.s32 %v280, 4294967272
          %v300 = vlaneseq
          %v301 = vshrl.u32 %v300, 7
          %v302 = vsub.s32 %v299, %v301
          %v303 = vrot.slane %v262, %v302
          %vm304 = vcmask 261312
          %v305 = vsel %vm304, %v303, %v298
          %v311 = vlaneseq
          %v312 = vshrl.u32 %v311, 7
          %v313 = vsub.s32 %v280, %v312
          %v314 = vrot.slane %v268, %v313
          %v315 = vlaneseq
          %v316 = vshrl.u32 %v315, 7
          %v317 = vsub.s32 %v285, %v316
          %v318 = vrot.slane %v270, %v317
          %v319 = vsel %vm290, %v318, %v314
          %v320 = vlaneseq
          %v321 = vshrl.u32 %v320, 7
          %v322 = vsub.s32 %v292, %v321
          %v323 = vrot.slane %v272, %v322
          %v324 = vsel %vm297, %v323, %v319
          %v325 = vlaneseq
          %v326 = vshrl.u32 %v325, 7
          %v327 = vsub.s32 %v299, %v326
          %v328 = vrot.slane %v274, %v327
          %v329 = vsel %vm304, %v328, %v324
          %vm331 = vcmask 1040384
          %v332 = vsel %vm331, %v305, %v329
          %v333 = vld [vmem:[%s1] sm:$0xff]
          %v334 = vld [vmem:[%s1 + $0x8] sm:$0xff]
          %v335 = vld [vmem:[%s1 + $0x10] sm:$0xff]
          %v336 = vld [vmem:[%s1 + $0x18] sm:$0xff]
          %v337 = vld [vmem:[%s2] sm:$0x3]
          %vm338 = vcmask 261120
          %v340 = vsel %vm338, %v332, 0
          %342 = vmatprep.subr.mxu0 0.0
          %343 = vmatpush1.msra.mxu0 0.0
          %344 = vmatprep.subr.mxu0 0.0
          %345 = vmatpush1.msra.mxu0 0.0
          %346 = vmatprep.subr.mxu0 0.0
          %347 = vmatpush1.msra.mxu0 0.0
          %348 = vmatprep.subr.mxu0 0.0
          %349 = vmatpush1.msra.mxu0 0.0
          %350 = vmatprep.subr.mxu0 0.0
          %351 = vmatpush1.msra.mxu0 0.0
          %352 = vmatprep.subr.mxu0 0.0
          %353 = vmatpush1.msra.mxu0 0.0
          %354 = vmatprep.subr.mxu0 0.0
          %355 = vmatpush1.msra.mxu0 0.0
          %356 = vmatprep.subr.mxu0 0.0
          %357 = vmatpush1.msra.mxu0 0.0
          %358 = vmatprep.subr.mxu0 0.0
          %359 = vmatpush1.msra.mxu0 0.0
          %360 = vmatprep.subr.mxu0 0.0
          %361 = vmatpush1.msra.mxu0 0.0
          %362 = vmatprep.subr.mxu0 0.0
          %363 = vmatpush1.msra.mxu0 0.0
          %364 = vmatprep.subr.mxu0 0.0
          %365 = vmatpush1.msra.mxu0 0.0
          %366 = vmatprep.subr.mxu0 0.0
          %367 = vmatpush1.msra.mxu0 %v336
          %368 = vmatprep.subr.mxu0 0.0
          %369 = vmatpush1.msra.mxu0 %v335
          %370 = vmatprep.subr.mxu0 0.0
          %371 = vmatpush1.msra.mxu0 %v334
          %372 = vmatprep.subr.mxu0 0.0
          %373 = vmatpush1.msra.mxu0 %v333
          %374 = vmatprep.subr.mxu0 0.0
          %375 = vmatpush2.msra.mxu0 0.0
          %376 = vmatprep.subr.mxu0 0.0
          %377 = vmatpush2.msra.mxu0 0.0
          %378 = vmatprep.subr.mxu0 0.0
          %379 = vmatpush2.msra.mxu0 0.0
          %380 = vmatprep.subr.mxu0 0.0
          %381 = vmatpush2.msra.mxu0 0.0
          %382 = vmatprep.subr.mxu0 0.0
          %383 = vmatpush2.msra.mxu0 0.0
          %384 = vmatprep.subr.mxu0 0.0
          %385 = vmatpush2.msra.mxu0 0.0
          %386 = vmatprep.subr.mxu0 0.0
          %387 = vmatpush2.msra.mxu0 0.0
          %388 = vmatprep.subr.mxu0 0.0
          %389 = vmatpush2.msra.mxu0 0.0
          %390 = vmatprep.subr.mxu0 0.0
          %391 = vmatpush2.msra.mxu0 0.0
          %392 = vmatprep.subr.mxu0 0.0
          %393 = vmatpush2.msra.mxu0 0.0
          %394 = vmatprep.subr.mxu0 0.0
          %395 = vmatpush2.msra.mxu0 0.0
          %396 = vmatprep.subr.mxu0 0.0
          %397 = vmatpush2.msra.mxu0 0.0
          %398 = vmatprep.subr.mxu0 0.0
          %399 = vmatpush2.msra.mxu0 0.0
          %400 = vmatprep.subr.mxu0 0.0
          %401 = vmatpush2.msra.mxu0 0.0
          %402 = vmatprep.subr.mxu0 0.0
          %403 = vmatpush2.msra.mxu0 0.0
          %404 = vmatprep.subr.mxu0 0.0
          %405 = vmatpush2.msra.mxu0 0.0
          %406 = vmatprep.mubr.f32.mxu0 0.0
          %407 = vmatmul.mubr.f32.gmra.mxu0 %v340
          %v408 = vpop.f32.mrf.mxu0
          %v409 = vadd.f32 0.0, %v408
          %v410 = vpop.f32.mrf.mxu0
          %411 = vdwg.mxu0
          %v412 = vmax.f32 %v409, 0.0
          %vm413 = vcmask 15360
          %v415 = vsel %vm413, %v412, 0
          %vm417 = vcmask 1041408
          %v419 = vsel %vm417, %v337, 0
          %421 = vmatprep.subr.mxu0 0.0
          %422 = vmatpush1.msra.mxu0 0.0
          %423 = vmatprep.subr.mxu0 0.0
          %424 = vmatpush1.msra.mxu0 0.0
          %425 = vmatprep.subr.mxu0 0.0
          %426 = vmatpush1.msra.mxu0 0.0
          %427 = vmatprep.subr.mxu0 0.0
          %428 = vmatpush1.msra.mxu0 0.0
          %429 = vmatprep.subr.mxu0 0.0
          %430 = vmatpush1.msra.mxu0 0.0
          %431 = vmatprep.subr.mxu0 0.0
          %432 = vmatpush1.msra.mxu0 0.0
          %433 = vmatprep.subr.mxu0 0.0
          %434 = vmatpush1.msra.mxu0 0.0
          %435 = vmatprep.subr.mxu0 0.0
          %436 = vmatpush1.msra.mxu0 0.0
          %437 = vmatprep.subr.mxu0 0.0
          %438 = vmatpush1.msra.mxu0 0.0
          %439 = vmatprep.subr.mxu0 0.0
          %440 = vmatpush1.msra.mxu0 0.0
          %441 = vmatprep.subr.mxu0 0.0
          %442 = vmatpush1.msra.mxu0 0.0
          %443 = vmatprep.subr.mxu0 0.0
          %444 = vmatpush1.msra.mxu0 0.0
          %445 = vmatprep.subr.mxu0 0.0
          %446 = vmatpush1.msra.mxu0 0.0
          %447 = vmatprep.subr.mxu0 0.0
          %448 = vmatpush1.msra.mxu0 0.0
          %449 = vmatprep.subr.mxu0 0.0
          %450 = vmatpush1.msra.mxu0 0.0
          %451 = vmatprep.subr.mxu0 0.0
          %452 = vmatpush1.msra.mxu0 %v419
          %453 = vmatprep.subr.mxu0 0.0
          %454 = vmatpush2.msra.mxu0 0.0
          %455 = vmatprep.subr.mxu0 0.0
          %456 = vmatpush2.msra.mxu0 0.0
          %457 = vmatprep.subr.mxu0 0.0
          %458 = vmatpush2.msra.mxu0 0.0
          %459 = vmatprep.subr.mxu0 0.0
          %460 = vmatpush2.msra.mxu0 0.0
          %461 = vmatprep.subr.mxu0 0.0
          %462 = vmatpush2.msra.mxu0 0.0
          %463 = vmatprep.subr.mxu0 0.0
          %464 = vmatpush2.msra.mxu0 0.0
          %465 = vmatprep.subr.mxu0 0.0
          %466 = vmatpush2.msra.mxu0 0.0
          %467 = vmatprep.subr.mxu0 0.0
          %468 = vmatpush2.msra.mxu0 0.0
          %469 = vmatprep.subr.mxu0 0.0
          %470 = vmatpush2.msra.mxu0 0.0
          %471 = vmatprep.subr.mxu0 0.0
          %472 = vmatpush2.msra.mxu0 0.0
          %473 = vmatprep.subr.mxu0 0.0
          %474 = vmatpush2.msra.mxu0 0.0
          %475 = vmatprep.subr.mxu0 0.0
          %476 = vmatpush2.msra.mxu0 0.0
          %477 = vmatprep.subr.mxu0 0.0
          %478 = vmatpush2.msra.mxu0 0.0
          %479 = vmatprep.subr.mxu0 0.0
          %480 = vmatpush2.msra.mxu0 0.0
          %481 = vmatprep.subr.mxu0 0.0
          %482 = vmatpush2.msra.mxu0 0.0
          %483 = vmatprep.subr.mxu0 0.0
          %484 = vmatpush2.msra.mxu0 0.0
          %485 = vmatprep.mubr.f32.mxu0 0.0
          %486 = vmatmul.mubr.f32.gmra.mxu0 %v415
          %v487 = vpop.f32.mrf.mxu0
          %v488 = vadd.f32 0.0, %v487
          %v489 = vpop.f32.mrf.mxu0
          %490 = vdwg.mxu0
          %v492 = vrot.slane %v488, 1
          %v494 = vadd.f32 %v488, %v492
          %v495 = vxor.u32 %v494, 2147483648
          %v496 = vmul.f32 %v495, 1.442695
          %v497 = vpow.pop %v496
          %v498 = vadd.f32 %v497, 1.0
          %v499 = vrcp.pop %v498
          %v500 = vmul.f32 1.0, %v499
          %vm501 = vcmask 253952
          %502 = vst.msk [vmem:[%s202] sm:$0x1] %vm501, %v500
        $region44: #{tpu_custom_call.1} parent=31 // pred_fallthru
          _
        %s503 = sand.u32 %s110, 1
        %s504 = scalar_lea.sflag [#allocation6], %s503
        %s505 = sand.u32 %s110, 1
        %s506 = scalar_lea.vmem [#allocation7], %s505
        // Predicated region
        $region45: #{tpu_custom_call.1} parent=31 // pred_check
          %p507 = pneg %p120
        $region46: #{tpu_custom_call.1} parent=31 // pred_check_branch
          %509 = sbr.rel (%p507) target = $region48
        $region47: #{tpu_custom_call.1} parent=31 // pred_region
          %s511 = ssub.s32 16, 16
          %512 = vsyncadd %s504, %s511
          %s513 = smul.addr %s24, 16
          %s514 = scalar_lea.hbm %s3, %s513
          %s516 = sshll.u32 %s506, 4
          %s517 = int_to_ptr.vmem [resolvable:$true] %s516
          %519 = dma.vmem_to_hbm [thread:$0]  %s517, 16, %s514, %s504
        $region48: #{tpu_custom_call.1} parent=31 // pred_fallthru
          _
      $region32: #{tpu_custom_call.1} parent=5 // pred_fallthru
        _
      %p520 = scmp.le.s32.totalorder 2, %s15
      // Predicated region
      $region49: #{tpu_custom_call.1} parent=5 // pred_check
        %p521 = pneg %p520
      $region50: #{tpu_custom_call.1} parent=5 // pred_check_branch
        %523 = sbr.rel (%p521) target = $region52
      $region51: #{tpu_custom_call.1} parent=5 // pred_region
        %s524 = ssub.s32 %s15, 2
        // Predicated region
        $region53: #{tpu_custom_call.1} parent=51 // pred_check
          %p525 = pneg %p126
        $region54: #{tpu_custom_call.1} parent=51 // pred_check_branch
          %527 = sbr.rel (%p525) target = $region56
        $region55: #{tpu_custom_call.1} parent=51 // pred_region
          %s528 = sand.u32 %s111, 1
          %s529 = scalar_lea.sflag [#allocation6], %s528
          %s530 = sand.u32 %s111, 1
          %s531 = scalar_lea.vmem [#allocation7], %s530
          %532 = dma.done %s529, 16
        $region56: #{tpu_custom_call.1} parent=51 // pred_fallthru
          _
      $region52: #{tpu_custom_call.1} parent=5 // pred_fallthru
        _
    $region6: #{tpu_custom_call.1} parent=1 // loop_footer
      %s19 = sadd.s32 1, %s15
    $region7: #{tpu_custom_call.1} parent=1 // loop_footer_branch
      %14 = sbr.rel target = $region3
    $region8: #{tpu_custom_call.1} parent=1 // loop_exit
      _
    %533 = vsyncpa [#allocation5], 1
    %s534 = scalar_lea.sflag [#allocation5], 1
    %535 = vsyncpa %s534, 1
    %536 = vsyncpa [#allocation6], 1
    %s537 = scalar_lea.sflag [#allocation6], 1
    %538 = vsyncpa %s537, 1

</llo_original>
